<compile_context>
chip_gen: v7x
topology: tpu7x:2x2x1
jax: 0.10.0
libtpu: 0.0.40
codegen_flags: <defaults>
</compile_context>

<pallas_src>
import functools

import numpy as np
import jax
import jax.numpy as jnp
from jax.experimental import pallas as pl
from jax.experimental.pallas import tpu as pltpu


def _round_up(x: int, m: int) -> int:
    return -(-x // m) * m


# ---------------------------------------------------------------------------
# Deterministic "parameters" (window, DFT matrices, mel filterbank), matching
# torch.hann_window / torchaudio defaults (htk mel scale, norm=None, onesided
# STFT, power=2, center=False).
# ---------------------------------------------------------------------------
def _hann_window(win_length: int) -> np.ndarray:
    # torch.hann_window(win_length, periodic=True)
    n = np.arange(win_length, dtype=np.float64)
    return (0.5 * (1.0 - np.cos(2.0 * np.pi * n / win_length))).astype(np.float32)


def _dft_matrices(n_fft: int):
    # X[k] = sum_n x[n] * exp(-2*pi*i*k*n/N), onesided (k = 0 .. N/2)
    n = np.arange(n_fft, dtype=np.float64)
    k = np.arange(n_fft // 2 + 1, dtype=np.float64)
    ang = 2.0 * np.pi * np.outer(n, k) / n_fft
    return np.cos(ang).astype(np.float32), np.sin(ang).astype(np.float32)


def _mel_filterbank(n_freqs: int, f_min: float, f_max: float,
                    n_mels: int, sample_rate: float) -> np.ndarray:
    # torchaudio.functional.melscale_fbanks, mel_scale="htk", norm=None
    all_freqs = np.linspace(0.0, sample_rate // 2, n_freqs)

    def hz_to_mel(f):
        return 2595.0 * np.log10(1.0 + f / 700.0)

    def mel_to_hz(m):
        return 700.0 * (10.0 ** (m / 2595.0) - 1.0)

    m_pts = np.linspace(hz_to_mel(f_min), hz_to_mel(f_max), n_mels + 2)
    f_pts = mel_to_hz(m_pts)
    f_diff = f_pts[1:] - f_pts[:-1]                       # (n_mels + 1,)
    slopes = f_pts[None, :] - all_freqs[:, None]          # (n_freqs, n_mels + 2)
    down = -slopes[:, :-2] / f_diff[:-1]
    up = slopes[:, 2:] / f_diff[1:]
    fb = np.maximum(0.0, np.minimum(down, up))
    return fb.astype(np.float32)                          # (n_freqs, n_mels)


# ---------------------------------------------------------------------------
# Pallas kernel: (windowed) DFT matmul -> power -> mel matmul -> log10
# ---------------------------------------------------------------------------
def _mel_kernel(f_ref, dft_ref, fb_ref, o_ref, *, n_freqs_pad, log, floor_level):
    # One MXU matmul for both real and imaginary parts (columns are
    # [win*cos | 0-pad | win*sin | 0-pad]); bf16 inputs, f32 accumulation.
    spec = jnp.dot(f_ref[...], dft_ref[...],
                   preferred_element_type=jnp.float32)      # (TR, 2*Fp)
    re = spec[:, :n_freqs_pad]                              # 128-aligned slice
    im = spec[:, n_freqs_pad:]
    power = re * re + im * im                               # (TR, Fp), f32
    mel = jnp.dot(power, fb_ref[...],
                  preferred_element_type=jnp.float32)       # (TR, Mp)
    if log:
        mel = jnp.log10(floor_level + mel)
    o_ref[...] = mel


def _mel_pallas(frames, dft, fb, *, row_tile, n_freqs_pad, n_mels_pad,
                log, floor_level):
    rows_p, n_fft = frames.shape
    two_fp = dft.shape[1]
    grid = (rows_p // row_tile,)

    kernel = functools.partial(_mel_kernel, n_freqs_pad=n_freqs_pad,
                               log=log, floor_level=floor_level)

    flops = (2 * rows_p * n_fft * two_fp            # DFT matmul
             + 3 * rows_p * n_freqs_pad             # power
             + 2 * rows_p * n_freqs_pad * n_mels_pad)  # mel matmul
    transcendentals = rows_p * n_mels_pad if log else 0
    bytes_accessed = (rows_p * n_fft * frames.dtype.itemsize
                      + n_fft * two_fp * dft.dtype.itemsize
                      + n_freqs_pad * n_mels_pad * fb.dtype.itemsize
                      + rows_p * n_mels_pad * 4)

    return pl.pallas_call(
        kernel,
        out_shape=jax.ShapeDtypeStruct((rows_p, n_mels_pad), jnp.float32),
        grid_spec=pltpu.PrefetchScalarGridSpec(
            num_scalar_prefetch=0,
            grid=grid,
            in_specs=[
                # frames: streamed per grid step, row tile a multiple of 128
                pl.BlockSpec((row_tile, n_fft), lambda i: (i, 0)),
                # grid-invariant constants (window folded into DFT, merged
                # cos|sin, lane-padded); fetched once, re-used every step
                pl.BlockSpec((n_fft, two_fp), lambda i: (0, 0)),
                pl.BlockSpec((n_freqs_pad, n_mels_pad), lambda i: (0, 0)),
            ],
            out_specs=pl.BlockSpec((row_tile, n_mels_pad), lambda i: (i, 0)),
        ),
        compiler_params=pltpu.CompilerParams(
            dimension_semantics=("parallel",)),
        cost_estimate=pl.CostEstimate(flops=int(flops),
                                      transcendentals=int(transcendentals),
                                      bytes_accessed=int(bytes_accessed)),
    )(frames, dft, fb)


# ---------------------------------------------------------------------------
# Module wrapper (glue in plain JAX)
# ---------------------------------------------------------------------------
class MelSpectrogramWrapper:
    def __init__(self, n_fft=1024, hop_length=256, win_length=None, n_mels=80,
                 sample_rate=22050.0, f_min=0.0, f_max=None, log=True,
                 normalized=False, floor_level=1e-5,
                 compute_dtype=jnp.bfloat16):
        self.n_fft = n_fft
        self.hop_length = int(hop_length)
        self.n_mels = n_mels
        self.log = log
        self.floor_level = float(floor_level)
        self.compute_dtype = compute_dtype

        win_length = win_length if win_length is not None else n_fft
        f_max = f_max if f_max is not None else sample_rate / 2.0

        win = _hann_window(win_length)
        if win_length < n_fft:  # torchaudio centers the window inside n_fft
            pad_l = (n_fft - win_length) // 2
            win = np.pad(win, (pad_l, n_fft - win_length - pad_l))
        if normalized:
            # torchaudio "window" normalization: stft / sqrt(sum(w^2))
            win = (win / np.sqrt(np.sum(win.astype(np.float64) ** 2))
                   ).astype(np.float32)

        n_freqs = n_fft // 2 + 1
        cos_m, sin_m = _dft_matrices(n_fft)                 # (n_fft, n_freqs)
        fb = _mel_filterbank(n_freqs, f_min, f_max, n_mels, sample_rate)

        # f32 unpadded copies for the pure-JAX reference check
        self._win_np = win
        self._cos_np = cos_m
        self._sin_np = sin_m
        self._fb_np = fb

        self.n_freqs = n_freqs
        self.n_freqs_pad = _round_up(n_freqs, 128)          # lane-dense spectrum
        self.n_mels_pad = _round_up(n_mels, 128)            # lane-dense output

        # Fold the Hann window into the DFT and merge cos|sin into one RHS,
        # zero-padded so every matmul dim is a multiple of 128.
        dft = np.zeros((n_fft, 2 * self.n_freqs_pad), dtype=np.float32)
        dft[:, :n_freqs] = win[:, None] * cos_m
        dft[:, self.n_freqs_pad:self.n_freqs_pad + n_freqs] = win[:, None] * sin_m

        fb_pad = np.zeros((self.n_freqs_pad, self.n_mels_pad), dtype=np.float32)
        fb_pad[:n_freqs, :n_mels] = fb

        # bf16 constants for the MXU-heavy DFT matmul; mel matmul stays f32.
        self.dft = jnp.asarray(dft, dtype=self.compute_dtype)
        self.fb_pad = jnp.asarray(fb_pad, dtype=jnp.float32)

    def _frame(self, x):
        # x: (B, C, T_padded); center=False STFT framing
        B, C, T = x.shape
        n_frames = (T - self.n_fft) // self.hop_length + 1
        idx = (np.arange(n_frames)[:, None] * self.hop_length
               + np.arange(self.n_fft)[None, :])
        frames = x[..., idx]                                # (B, C, n_frames, n_fft)
        return frames, n_frames

    def __call__(self, x):
        p = int((self.n_fft - self.hop_length) // 2)
        if x.ndim == 2:
            x = x[:, None, :]                               # (B, 1, T)
        x = jnp.pad(x, ((0, 0), (0, 0), (p, p)), mode='reflect')

        # pad_for_conv1d
        length = x.shape[-1]
        n_frames_c = (length + self.hop_length - 1) // self.hop_length
        desired = (n_frames_c - 1) * self.hop_length + self.n_fft
        pad = max(0, desired - length)
        if pad > 0:
            x = jnp.pad(x, ((0, 0), (0, 0), (0, pad)))

        B, C, _ = x.shape
        # TODO(synk): build overlapping frames from the raw audio inside the
        # kernel (manual DMA) to avoid the ~n_fft/hop x HBM read amplification
        # from host-side framing.
        frames, nf = self._frame(x)
        rows = B * C * nf
        frames = frames.reshape(rows, self.n_fft).astype(self.compute_dtype)

        # Large, MXU-friendly row tile; pad rows to a multiple of it.
        row_tile = min(256, _round_up(max(rows, 1), 128))
        rows_p = _round_up(rows, row_tile)
        if rows_p > rows:
            frames = jnp.pad(frames, ((0, rows_p - rows), (0, 0)))

        mel = _mel_pallas(frames, self.dft, self.fb_pad,
                          row_tile=row_tile,
                          n_freqs_pad=self.n_freqs_pad,
                          n_mels_pad=self.n_mels_pad,
                          log=self.log, floor_level=self.floor_level)

        mel = mel[:rows, :self.n_mels].reshape(B, C, nf, self.n_mels)
        mel = jnp.transpose(mel, (0, 1, 3, 2))              # (B, C, n_mels, nf)
        return mel.reshape(B, C * self.n_mels, nf)


# ---------------------------------------------------------------------------
# Pure-JAX reference (full f32, HIGHEST precision) for a sanity check.
# ---------------------------------------------------------------------------
def _reference(mod: MelSpectrogramWrapper, x):
    p = int((mod.n_fft - mod.hop_length) // 2)
    if x.ndim == 2:
        x = x[:, None, :]
    x = jnp.pad(x, ((0, 0), (0, 0), (p, p)), mode='reflect')
    length = x.shape[-1]
    n_frames = (length + mod.hop_length - 1) // mod.hop_length
    desired = (n_frames - 1) * mod.hop_length + mod.n_fft
    pad = max(0, desired - length)
    if pad > 0:
        x = jnp.pad(x, ((0, 0), (0, 0), (0, pad)))
    B, C, _ = x.shape
    frames, nf = mod._frame(x)
    win = jnp.asarray(mod._win_np)
    cos = jnp.asarray(mod._cos_np)
    sin = jnp.asarray(mod._sin_np)
    fb = jnp.asarray(mod._fb_np)
    xw = frames.astype(jnp.float32) * win
    re = jnp.einsum('bcfn,nk->bcfk', xw, cos,
                    precision=jax.lax.Precision.HIGHEST)
    im = jnp.einsum('bcfn,nk->bcfk', xw, sin,
                    precision=jax.lax.Precision.HIGHEST)
    power = re * re + im * im
    mel = jnp.einsum('bcfk,km->bcfm', power, fb,
                     precision=jax.lax.Precision.HIGHEST)
    if mod.log:
        mel = jnp.log10(mod.floor_level + mel)
    mel = jnp.transpose(mel, (0, 1, 3, 2))
    return mel.reshape(B, C * mod.n_mels, nf)


if __name__ == "__main__":
    key = jax.random.PRNGKey(0)
    B, T = 2, 256
    x = jax.random.normal(key, (B, T), dtype=jnp.float32)

    # Small, TPU-friendly configuration consistent with the module's interface.
    mod = MelSpectrogramWrapper(n_fft=128, hop_length=32, win_length=None,
                                n_mels=16, sample_rate=22050.0,
                                f_min=0.0, f_max=None, log=True,
                                normalized=False, floor_level=1e-5)

    out = jax.block_until_ready(mod(x))
    ref = jax.block_until_ready(_reference(mod, x))
    assert out.shape == ref.shape, (out.shape, ref.shape)
    np.testing.assert_allclose(np.asarray(out), np.asarray(ref),
                               rtol=5e-2, atol=5e-2)

    print("KERNEL_OK")
</pallas_src>

<mosaic_0001>
module attributes {stable_mosaic.version = 11 : i64} {
  func.func @_mel_kernel(%arg0: i32, %arg1: memref<128x128xbf16, #tpu.memory_space<vmem>>, %arg2: memref<128x256xbf16, #tpu.memory_space<vmem>>, %arg3: memref<128x128xf32, #tpu.memory_space<vmem>>, %arg4: memref<128x128xf32, #tpu.memory_space<vmem>>) attributes {dimension_semantics = [#tpu.dimension_semantics<parallel>], iteration_bounds = array<i64: 1>, scalar_prefetch = 0 : i64, scratch_operands = 0 : i64, tpu.core_type = #tpu.core_type<tc>, window_params = [{transform_indices = @transform_0, window_bounds = array<i64: 128, 128>}, {pipeline_mode = #tpu.pipeline_mode<synchronous>, transform_indices = @transform_1, window_bounds = array<i64: 128, 256>}, {pipeline_mode = #tpu.pipeline_mode<synchronous>, transform_indices = @transform_2, window_bounds = array<i64: 128, 128>}, {transform_indices = @transform_3, window_bounds = array<i64: 128, 128>}]} {
    %c0 = arith.constant 0 : index
    %c0_0 = arith.constant 0 : index
    %0 = vector.load %arg1[%c0, %c0_0] : memref<128x128xbf16, #tpu.memory_space<vmem>>, vector<128x128xbf16>
    %c0_1 = arith.constant 0 : index
    %c0_2 = arith.constant 0 : index
    %1 = vector.load %arg2[%c0_1, %c0_2] : memref<128x256xbf16, #tpu.memory_space<vmem>>, vector<128x256xbf16>
    %cst = arith.constant dense<0.000000e+00> : vector<128x256xf32>
    %2 = tpu.matmul %0, %1, %cst {dimension_numbers = #tpu.dot_dimension_numbers<[1], [0], [0], [1], [0, 0, 1, 1], [], []>} : vector<128x128xbf16>, vector<128x256xbf16>, vector<128x256xf32> -> vector<128x256xf32>
    %3 = vector.extract_strided_slice %2 {offsets = [0, 0], sizes = [128, 128], strides = [1, 1]} : vector<128x256xf32> to vector<128x128xf32>
    %4 = vector.extract_strided_slice %2 {offsets = [0, 128], sizes = [128, 128], strides = [1, 1]} : vector<128x256xf32> to vector<128x128xf32>
    %5 = arith.mulf %3, %3 : vector<128x128xf32>
    %6 = arith.mulf %4, %4 : vector<128x128xf32>
    %7 = arith.addf %5, %6 : vector<128x128xf32>
    %c0_3 = arith.constant 0 : index
    %c0_4 = arith.constant 0 : index
    %8 = vector.load %arg3[%c0_3, %c0_4] : memref<128x128xf32, #tpu.memory_space<vmem>>, vector<128x128xf32>
    %cst_5 = arith.constant dense<0.000000e+00> : vector<128x128xf32>
    %9 = tpu.matmul %7, %8, %cst_5 {dimension_numbers = #tpu.dot_dimension_numbers<[1], [0], [0], [1], [0, 0, 1, 1], [], []>} : vector<128x128xf32>, vector<128x128xf32>, vector<128x128xf32> -> vector<128x128xf32>
    %cst_6 = arith.constant 9.99999974E-6 : f32
    %10 = vector.broadcast %cst_6 : f32 to vector<128x128xf32>
    %11 = arith.addf %10, %9 : vector<128x128xf32>
    %12 = math.log %11 : vector<128x128xf32>
    %cst_7 = arith.constant 0.434294492 : f32
    %13 = vector.broadcast %cst_7 : f32 to vector<128x128xf32>
    %14 = arith.mulf %12, %13 : vector<128x128xf32>
    %c0_8 = arith.constant 0 : index
    %c0_9 = arith.constant 0 : index
    %15 = vector.load %arg4[%c0_8, %c0_9] : memref<128x128xf32, #tpu.memory_space<vmem>>, vector<128x128xf32>
    tpu.vector_store %arg4[%c0_8, %c0_9], %14 {strides = array<i32>} : memref<128x128xf32, #tpu.memory_space<vmem>>, vector<128x128xf32>,
    return
  }
  func.func @transform_0(%arg0: i32) -> (i32, i32) {
    %c0_i32 = arith.constant 0 : i32
    %c0_i32_0 = arith.constant 0 : i32
    return %arg0, %c0_i32 : i32, i32
  }
  func.func @transform_1(%arg0: i32) -> (i32, i32) {
    %c0_i32 = arith.constant 0 : i32
    %c0_i32_0 = arith.constant 0 : i32
    %c0_i32_1 = arith.constant 0 : i32
    return %c0_i32, %c0_i32_0 : i32, i32
  }
  func.func @transform_2(%arg0: i32) -> (i32, i32) {
    %c0_i32 = arith.constant 0 : i32
    %c0_i32_0 = arith.constant 0 : i32
    %c0_i32_1 = arith.constant 0 : i32
    return %c0_i32, %c0_i32_0 : i32, i32
  }
  func.func @transform_3(%arg0: i32) -> (i32, i32) {
    %c0_i32 = arith.constant 0 : i32
    %c0_i32_0 = arith.constant 0 : i32
    return %arg0, %c0_i32 : i32, i32
  }
}

</mosaic_0001>

<llo_original>
// kernel: tpu_custom_call.1
$region0: #{tpu_custom_call.1}
  #allocation0 [shape = 'u32[]', space=smem, size = 0x4, offset = 0x4, fixed_abs, tag = 'smem constant byte address 0x4 - core index']
  #allocation1 [shape = 'u32[144,128]{1,0:T(1,128)}', space=vmem, size = 0x12000, scoped, tag = 'internal scratch']
  %s0 = inlined_call_operand.hbm [shape: bf16[128,128], index: 0, kind: input, shape index: {}]
  %s1 = inlined_call_operand.hbm [shape: bf16[128,256], index: 1, kind: input, shape index: {}]
  %s2 = inlined_call_operand.hbm [shape: f32[128,128], index: 2, kind: input, shape index: {}]
  %s3 = inlined_call_operand.hbm [shape: f32[128,128], index: 3, kind: output, shape index: {}]
  %s4 = sld [smem:[#allocation0]]
  $region34: #{tpu_custom_call.1} parent=0
    _
  %s6 = ssub.s32 1, %s4
  %s7 = scalar_select 0, %s6, %s4
  $region1: #{tpu_custom_call.1} parent=0
    #allocation2 [shape = 'u8[32768]{0}', space=vmem, size = 0x8000, scoped, tag = 'input window, operand 0, single buffered']
    #allocation3 [shape = 's32[1]{0}', space=sflag, size = 0x4, scoped, tag = 'scoped memory for tpu_custom_call.1']
    #allocation4 [shape = 's32[1]{0}', space=sflag, size = 0x4, scoped, tag = 'scoped memory for tpu_custom_call.1']
    #allocation5 [shape = 'u8[65536]{0}', space=vmem, size = 0x10000, scoped, tag = 'input window, operand 1, single buffered']
    #allocation6 [shape = 's32[1]{0}', space=sflag, size = 0x4, scoped, tag = 'scoped memory for tpu_custom_call.1']
    #allocation7 [shape = 'u8[65536]{0}', space=vmem, size = 0x10000, scoped, tag = 'input window, operand 2, single buffered']
    #allocation8 [shape = 'u8[65536]{0}', space=vmem, size = 0x10000, scoped, tag = 'output window, operand 0, single buffered']
    %8 = vsyncpa [#allocation3], 0
    %9 = vsyncpa [#allocation6], 0
    %10 = vsyncpa [#allocation4], 0
    // Predicated region
    $region2: #{tpu_custom_call.1} parent=1 // pred_check
      _
    $region3: #{tpu_custom_call.1} parent=1 // pred_check_branch
      %12 = sbr.rel (0) target = $region5
    $region4: #{tpu_custom_call.1} parent=1 // pred_region
      %s14 = ssub.s32 1024, 1024
      %15 = vsyncadd [#allocation3], %s14
      %s16 = sshll.u32 [#allocation2], 4
      %s17 = int_to_ptr.vmem [resolvable:$true] %s16
      %22 = dma.hbm_to_vmem [thread:$0]  %s0, 1024, %s17, [#allocation3], 64, 64, 4
    $region5: #{tpu_custom_call.1} parent=1 // pred_fallthru
      _
    // Predicated region
    $region6: #{tpu_custom_call.1} parent=1 // pred_check
      _
    $region7: #{tpu_custom_call.1} parent=1 // pred_check_branch
      %24 = sbr.rel (0) target = $region9
    $region8: #{tpu_custom_call.1} parent=1 // pred_region
      %s26 = ssub.s32 2048, 2048
      %27 = vsyncadd [#allocation6], %s26
      %s28 = sshll.u32 [#allocation5], 4
      %s29 = int_to_ptr.vmem [resolvable:$true] %s28
      %34 = dma.hbm_to_vmem [thread:$0]  %s1, 2048, %s29, [#allocation6], 128, 128, 8
    $region9: #{tpu_custom_call.1} parent=1 // pred_fallthru
      _
    // Predicated region
    $region10: #{tpu_custom_call.1} parent=1 // pred_check
      _
    $region11: #{tpu_custom_call.1} parent=1 // pred_check_branch
      %36 = sbr.rel (0) target = $region13
    $region12: #{tpu_custom_call.1} parent=1 // pred_region
      %s38 = ssub.s32 2048, 2048
      %39 = vsyncadd [#allocation6], %s38
      %s40 = sshll.u32 [#allocation7], 4
      %s41 = int_to_ptr.vmem [resolvable:$true] %s40
      %46 = dma.hbm_to_vmem [thread:$0]  %s2, 2048, %s41, [#allocation6], 128, 128, 8
    $region13: #{tpu_custom_call.1} parent=1 // pred_fallthru
      _
    // Predicated region
    $region14: #{tpu_custom_call.1} parent=1 // pred_check
      _
    $region15: #{tpu_custom_call.1} parent=1 // pred_check_branch
      %48 = sbr.rel (0) target = $region17
    $region16: #{tpu_custom_call.1} parent=1 // pred_region
      %49 = dma.done [#allocation3], 1024
    $region17: #{tpu_custom_call.1} parent=1 // pred_fallthru
      _
    // Predicated region
    $region18: #{tpu_custom_call.1} parent=1 // pred_check
      _
    $region19: #{tpu_custom_call.1} parent=1 // pred_check_branch
      %51 = sbr.rel (0) target = $region21
    $region20: #{tpu_custom_call.1} parent=1 // pred_region
      %52 = dma.done [#allocation6], 2048
    $region21: #{tpu_custom_call.1} parent=1 // pred_fallthru
      _
    // Predicated region
    $region22: #{tpu_custom_call.1} parent=1 // pred_check
      _
    $region23: #{tpu_custom_call.1} parent=1 // pred_check_branch
      %54 = sbr.rel (0) target = $region25
    $region24: #{tpu_custom_call.1} parent=1 // pred_region
      %55 = dma.done [#allocation6], 2048
    $region25: #{tpu_custom_call.1} parent=1 // pred_fallthru
      _
    %v57 = vld [vmem:[#allocation2] sm:$0xf]
    %v58 = vld [vmem:[#allocation2 + $0x4] sm:$0xf]
    %v59 = vld [vmem:[#allocation2 + $0x8] sm:$0xf]
    %v60 = vld [vmem:[#allocation2 + $0xc] sm:$0xf]
    %v61 = vld [vmem:[#allocation2 + $0x10] sm:$0xf]
    %v62 = vld [vmem:[#allocation2 + $0x14] sm:$0xf]
    %v63 = vld [vmem:[#allocation2 + $0x18] sm:$0xf]
    %v64 = vld [vmem:[#allocation2 + $0x1c] sm:$0xf]
    %v65 = vld [vmem:[#allocation2 + $0x20] sm:$0xf]
    %v66 = vld [vmem:[#allocation2 + $0x24] sm:$0xf]
    %v67 = vld [vmem:[#allocation2 + $0x28] sm:$0xf]
    %v68 = vld [vmem:[#allocation2 + $0x2c] sm:$0xf]
    %v69 = vld [vmem:[#allocation2 + $0x30] sm:$0xf]
    %v70 = vld [vmem:[#allocation2 + $0x34] sm:$0xf]
    %v71 = vld [vmem:[#allocation2 + $0x38] sm:$0xf]
    %v72 = vld [vmem:[#allocation2 + $0x3c] sm:$0xf]
    %v73 = vld [vmem:[#allocation5] sm:$0xff]
    %v74 = vld [vmem:[#allocation5 + $0x8] sm:$0xff]
    %v75 = vld [vmem:[#allocation5 + $0x10] sm:$0xff]
    %v76 = vld [vmem:[#allocation5 + $0x18] sm:$0xff]
    %v77 = vld [vmem:[#allocation5 + $0x20] sm:$0xff]
    %v78 = vld [vmem:[#allocation5 + $0x28] sm:$0xff]
    %v79 = vld [vmem:[#allocation5 + $0x30] sm:$0xff]
    %v80 = vld [vmem:[#allocation5 + $0x38] sm:$0xff]
    %v81 = vld [vmem:[#allocation5 + $0x40] sm:$0xff]
    %v82 = vld [vmem:[#allocation5 + $0x48] sm:$0xff]
    %v83 = vld [vmem:[#allocation5 + $0x50] sm:$0xff]
    %v84 = vld [vmem:[#allocation5 + $0x58] sm:$0xff]
    %v85 = vld [vmem:[#allocation5 + $0x60] sm:$0xff]
    %v86 = vld [vmem:[#allocation5 + $0x68] sm:$0xff]
    %v87 = vld [vmem:[#allocation5 + $0x70] sm:$0xff]
    %v88 = vld [vmem:[#allocation5 + $0x78] sm:$0xff]
    %v105 = vunpack.c.l.b16 %v57
    %v106 = vunpack.c.l.b16 %v58
    %v107 = vunpack.c.l.b16 %v59
    %v108 = vunpack.c.l.b16 %v60
    %v109 = vunpack.c.l.b16 %v61
    %v110 = vunpack.c.l.b16 %v62
    %v111 = vunpack.c.l.b16 %v63
    %v112 = vunpack.c.l.b16 %v64
    %v113 = vunpack.c.l.b16 %v65
    %v114 = vunpack.c.l.b16 %v66
    %v115 = vunpack.c.l.b16 %v67
    %v116 = vunpack.c.l.b16 %v68
    %v117 = vunpack.c.l.b16 %v69
    %v118 = vunpack.c.l.b16 %v70
    %v119 = vunpack.c.l.b16 %v71
    %v120 = vunpack.c.l.b16 %v72
    %v121 = vpack.c.b16 %v106, %v105
    %v122 = vpack.c.b16 %v108, %v107
    %v123 = vpack.c.b16 %v110, %v109
    %v124 = vpack.c.b16 %v112, %v111
    %v125 = vpack.c.b16 %v114, %v113
    %v126 = vpack.c.b16 %v116, %v115
    %v127 = vpack.c.b16 %v118, %v117
    %v128 = vpack.c.b16 %v120, %v119
    %v153 = vunpack.c.l.b16 %v73
    %v154 = vunpack.c.h.b16 %v73
    %v155 = vunpack.c.l.b16 %v74
    %v156 = vunpack.c.h.b16 %v74
    %v157 = vunpack.c.l.b16 %v75
    %v158 = vunpack.c.h.b16 %v75
    %v159 = vunpack.c.l.b16 %v76
    %v160 = vunpack.c.h.b16 %v76
    %v161 = vunpack.c.l.b16 %v77
    %v162 = vunpack.c.h.b16 %v77
    %v163 = vunpack.c.l.b16 %v78
    %v164 = vunpack.c.h.b16 %v78
    %v165 = vunpack.c.l.b16 %v79
    %v166 = vunpack.c.h.b16 %v79
    %v167 = vunpack.c.l.b16 %v80
    %v168 = vunpack.c.h.b16 %v80
    %v169 = vunpack.c.l.b16 %v81
    %v170 = vunpack.c.h.b16 %v81
    %v171 = vunpack.c.l.b16 %v82
    %v172 = vunpack.c.h.b16 %v82
    %v173 = vunpack.c.l.b16 %v83
    %v174 = vunpack.c.h.b16 %v83
    %v175 = vunpack.c.l.b16 %v84
    %v176 = vunpack.c.h.b16 %v84
    %v177 = vunpack.c.l.b16 %v85
    %v178 = vunpack.c.h.b16 %v85
    %v179 = vunpack.c.l.b16 %v86
    %v180 = vunpack.c.h.b16 %v86
    %v181 = vunpack.c.l.b16 %v87
    %v182 = vunpack.c.h.b16 %v87
    %v183 = vunpack.c.l.b16 %v88
    %v184 = vunpack.c.h.b16 %v88
    %v185 = vpack.c.b16 %v155, %v153
    %v186 = vpack.c.b16 %v156, %v154
    %v187 = vpack.c.b16 %v159, %v157
    %v188 = vpack.c.b16 %v160, %v158
    %v189 = vpack.c.b16 %v163, %v161
    %v190 = vpack.c.b16 %v164, %v162
    %v191 = vpack.c.b16 %v167, %v165
    %v192 = vpack.c.b16 %v168, %v166
    %v193 = vpack.c.b16 %v171, %v169
    %v194 = vpack.c.b16 %v172, %v170
    %v195 = vpack.c.b16 %v175, %v173
    %v196 = vpack.c.b16 %v176, %v174
    %v197 = vpack.c.b16 %v179, %v177
    %v198 = vpack.c.b16 %v180, %v178
    %v199 = vpack.c.b16 %v183, %v181
    %v200 = vpack.c.b16 %v184, %v182
    %217 = vmatprep.subr.bf16.mxu0 %v186
    %218 = vmatpush1.bf16.msra.mxu0 %v185
    %219 = vmatprep.subr.bf16.mxu0 %v188
    %220 = vmatpush1.bf16.msra.mxu0 %v187
    %221 = vmatprep.subr.bf16.mxu0 %v190
    %222 = vmatpush1.bf16.msra.mxu0 %v189
    %223 = vmatprep.subr.bf16.mxu0 %v192
    %224 = vmatpush1.bf16.msra.mxu0 %v191
    %225 = vmatprep.subr.bf16.mxu0 %v194
    %226 = vmatpush1.bf16.msra.mxu0 %v193
    %227 = vmatprep.subr.bf16.mxu0 %v196
    %228 = vmatpush1.bf16.msra.mxu0 %v195
    %229 = vmatprep.subr.bf16.mxu0 %v198
    %230 = vmatpush1.bf16.msra.mxu0 %v197
    %231 = vmatprep.subr.bf16.mxu0 %v200
    %232 = vmatpush1.bf16.msra.mxu0 %v199
    %233 = vmatprep.subr.bf16.mxu0 0
    %234 = vmatpush1.bf16.msra.mxu0 0
    %235 = vmatprep.subr.bf16.mxu0 0
    %236 = vmatpush1.bf16.msra.mxu0 0
    %237 = vmatprep.subr.bf16.mxu0 0
    %238 = vmatpush1.bf16.msra.mxu0 0
    %239 = vmatprep.subr.bf16.mxu0 0
    %240 = vmatpush1.bf16.msra.mxu0 0
    %241 = vmatprep.subr.bf16.mxu0 0
    %242 = vmatpush1.bf16.msra.mxu0 0
    %243 = vmatprep.subr.bf16.mxu0 0
    %244 = vmatpush1.bf16.msra.mxu0 0
    %245 = vmatprep.subr.bf16.mxu0 0
    %246 = vmatpush1.bf16.msra.mxu0 0
    %247 = vmatprep.subr.bf16.mxu0 0
    %248 = vmatpush1.bf16.msra.mxu0 0
    %249 = vmatprep.mubr.bf16.mxu0 0
    %250 = vmatmul.mubr.bf16.gmra.mrb[0].mxu0 %v121
    %v251 = vpop.f32.mrb[0].mxu0
    %v252 = vadd.f32 0.0, %v251
    %v253 = vpop.f32.mrb[0].mxu0
    %v254 = vadd.f32 0.0, %v253
    %v255 = vpop.f32.mrb[0].mxu0
    %v256 = vadd.f32 0.0, %v255
    %v257 = vpop.f32.mrb[0].mxu0
    %v258 = vadd.f32 0.0, %v257
    %259 = vmatprep.mubr.bf16.mxu0 0
    %260 = vmatmul.mubr.bf16.gmra.mrb[0].mxu0 %v122
    %v261 = vpop.f32.mrb[0].mxu0
    %v262 = vadd.f32 0.0, %v261
    %v263 = vpop.f32.mrb[0].mxu0
    %v264 = vadd.f32 0.0, %v263
    %v265 = vpop.f32.mrb[0].mxu0
    %v266 = vadd.f32 0.0, %v265
    %v267 = vpop.f32.mrb[0].mxu0
    %v268 = vadd.f32 0.0, %v267
    %269 = vmatprep.mubr.bf16.mxu0 0
    %270 = vmatmul.mubr.bf16.gmra.mrb[0].mxu0 %v123
    %v271 = vpop.f32.mrb[0].mxu0
    %v272 = vadd.f32 0.0, %v271
    %v273 = vpop.f32.mrb[0].mxu0
    %v274 = vadd.f32 0.0, %v273
    %v275 = vpop.f32.mrb[0].mxu0
    %v276 = vadd.f32 0.0, %v275
    %v277 = vpop.f32.mrb[0].mxu0
    %v278 = vadd.f32 0.0, %v277
    %279 = vmatprep.mubr.bf16.mxu0 0
    %280 = vmatmul.mubr.bf16.gmra.mrb[0].mxu0 %v124
    %v281 = vpop.f32.mrb[0].mxu0
    %v282 = vadd.f32 0.0, %v281
    %v283 = vpop.f32.mrb[0].mxu0
    %v284 = vadd.f32 0.0, %v283
    %v285 = vpop.f32.mrb[0].mxu0
    %v286 = vadd.f32 0.0, %v285
    %v287 = vpop.f32.mrb[0].mxu0
    %v288 = vadd.f32 0.0, %v287
    %289 = vmatprep.mubr.bf16.mxu0 0
    %290 = vmatmul.mubr.bf16.gmra.mrb[0].mxu0 %v125
    %v291 = vpop.f32.mrb[0].mxu0
    %v292 = vadd.f32 0.0, %v291
    %v293 = vpop.f32.mrb[0].mxu0
    %v294 = vadd.f32 0.0, %v293
    %v295 = vpop.f32.mrb[0].mxu0
    %v296 = vadd.f32 0.0, %v295
    %v297 = vpop.f32.mrb[0].mxu0
    %v298 = vadd.f32 0.0, %v297
    %299 = vmatprep.mubr.bf16.mxu0 0
    %300 = vmatmul.mubr.bf16.gmra.mrb[0].mxu0 %v126
    %v301 = vpop.f32.mrb[0].mxu0
    %v302 = vadd.f32 0.0, %v301
    %v303 = vpop.f32.mrb[0].mxu0
    %v304 = vadd.f32 0.0, %v303
    %v305 = vpop.f32.mrb[0].mxu0
    %v306 = vadd.f32 0.0, %v305
    %v307 = vpop.f32.mrb[0].mxu0
    %v308 = vadd.f32 0.0, %v307
    %309 = vmatprep.mubr.bf16.mxu0 0
    %310 = vmatmul.mubr.bf16.gmra.mrb[0].mxu0 %v127
    %v311 = vpop.f32.mrb[0].mxu0
    %v312 = vadd.f32 0.0, %v311
    %v313 = vpop.f32.mrb[0].mxu0
    %v314 = vadd.f32 0.0, %v313
    %v315 = vpop.f32.mrb[0].mxu0
    %v316 = vadd.f32 0.0, %v315
    %v317 = vpop.f32.mrb[0].mxu0
    %v318 = vadd.f32 0.0, %v317
    %319 = vmatprep.mubr.bf16.mxu0 0
    %320 = vmatmul.mubr.bf16.gmra.mrb[0].mxu0 %v128
    %v321 = vpop.f32.mrb[0].mxu0
    %v322 = vadd.f32 0.0, %v321
    %v323 = vpop.f32.mrb[0].mxu0
    %v324 = vadd.f32 0.0, %v323
    %v325 = vpop.f32.mrb[0].mxu0
    %v326 = vadd.f32 0.0, %v325
    %v327 = vpop.f32.mrb[0].mxu0
    %v328 = vadd.f32 0.0, %v327
    %329 = vdwg.mxu0
    %v330 = vmul.f32 %v252, %v252
    %v331 = vmul.f32 %v256, %v256
    %v332 = vmul.f32 %v262, %v262
    %v333 = vmul.f32 %v266, %v266
    %v334 = vmul.f32 %v272, %v272
    %v335 = vmul.f32 %v276, %v276
    %v336 = vmul.f32 %v282, %v282
    %v337 = vmul.f32 %v286, %v286
    %v338 = vmul.f32 %v292, %v292
    %v339 = vmul.f32 %v296, %v296
    %v340 = vmul.f32 %v302, %v302
    %v341 = vmul.f32 %v306, %v306
    %v342 = vmul.f32 %v312, %v312
    %v343 = vmul.f32 %v316, %v316
    %v344 = vmul.f32 %v322, %v322
    %v345 = vmul.f32 %v326, %v326
    %v346 = vmul.f32 %v254, %v254
    %v347 = vmul.f32 %v258, %v258
    %v348 = vmul.f32 %v264, %v264
    %v349 = vmul.f32 %v268, %v268
    %v350 = vmul.f32 %v274, %v274
    %v351 = vmul.f32 %v278, %v278
    %v352 = vmul.f32 %v284, %v284
    %v353 = vmul.f32 %v288, %v288
    %v354 = vmul.f32 %v294, %v294
    %v355 = vmul.f32 %v298, %v298
    %v356 = vmul.f32 %v304, %v304
    %v357 = vmul.f32 %v308, %v308
    %v358 = vmul.f32 %v314, %v314
    %v359 = vmul.f32 %v318, %v318
    %v360 = vmul.f32 %v324, %v324
    %v361 = vmul.f32 %v328, %v328
    %v362 = vadd.f32 %v330, %v346
    %v363 = vadd.f32 %v331, %v347
    %v364 = vadd.f32 %v332, %v348
    %v365 = vadd.f32 %v333, %v349
    %v366 = vadd.f32 %v334, %v350
    %v367 = vadd.f32 %v335, %v351
    %v368 = vadd.f32 %v336, %v352
    %v369 = vadd.f32 %v337, %v353
    %v370 = vadd.f32 %v338, %v354
    %v371 = vadd.f32 %v339, %v355
    %v372 = vadd.f32 %v340, %v356
    %v373 = vadd.f32 %v341, %v357
    %v374 = vadd.f32 %v342, %v358
    %v375 = vadd.f32 %v343, %v359
    %v376 = vadd.f32 %v344, %v360
    %v377 = vadd.f32 %v345, %v361
    %v378 = vld [vmem:[#allocation7] sm:$0xff]
    %v379 = vld [vmem:[#allocation7 + $0x8] sm:$0xff]
    %v380 = vld [vmem:[#allocation7 + $0x10] sm:$0xff]
    %v381 = vld [vmem:[#allocation7 + $0x18] sm:$0xff]
    %v382 = vld [vmem:[#allocation7 + $0x20] sm:$0xff]
    %v383 = vld [vmem:[#allocation7 + $0x28] sm:$0xff]
    %v384 = vld [vmem:[#allocation7 + $0x30] sm:$0xff]
    %v385 = vld [vmem:[#allocation7 + $0x38] sm:$0xff]
    %v386 = vld [vmem:[#allocation7 + $0x40] sm:$0xff]
    %v387 = vld [vmem:[#allocation7 + $0x48] sm:$0xff]
    %v388 = vld [vmem:[#allocation7 + $0x50] sm:$0xff]
    %v389 = vld [vmem:[#allocation7 + $0x58] sm:$0xff]
    %v390 = vld [vmem:[#allocation7 + $0x60] sm:$0xff]
    %v391 = vld [vmem:[#allocation7 + $0x68] sm:$0xff]
    %v392 = vld [vmem:[#allocation7 + $0x70] sm:$0xff]
    %v393 = vld [vmem:[#allocation7 + $0x78] sm:$0xff]
    %394 = vmatprep.subr.mxu0 0.0
    %395 = vmatpush1.msra.mxu0 %v378
    %396 = vmatprep.subr.mxu0 0.0
    %397 = vmatpush1.msra.mxu0 %v379
    %398 = vmatprep.subr.mxu0 0.0
    %399 = vmatpush1.msra.mxu0 %v380
    %400 = vmatprep.subr.mxu0 0.0
    %401 = vmatpush1.msra.mxu0 %v381
    %402 = vmatprep.subr.mxu0 0.0
    %403 = vmatpush1.msra.mxu0 %v382
    %404 = vmatprep.subr.mxu0 0.0
    %405 = vmatpush1.msra.mxu0 %v383
    %406 = vmatprep.subr.mxu0 0.0
    %407 = vmatpush1.msra.mxu0 %v384
    %408 = vmatprep.subr.mxu0 0.0
    %409 = vmatpush1.msra.mxu0 %v385
    %410 = vmatprep.subr.mxu0 0.0
    %411 = vmatpush1.msra.mxu0 %v386
    %412 = vmatprep.subr.mxu0 0.0
    %413 = vmatpush1.msra.mxu0 %v387
    %414 = vmatprep.subr.mxu0 0.0
    %415 = vmatpush1.msra.mxu0 %v388
    %416 = vmatprep.subr.mxu0 0.0
    %417 = vmatpush1.msra.mxu0 %v389
    %418 = vmatprep.subr.mxu0 0.0
    %419 = vmatpush1.msra.mxu0 %v390
    %420 = vmatprep.subr.mxu0 0.0
    %421 = vmatpush1.msra.mxu0 %v391
    %422 = vmatprep.subr.mxu0 0.0
    %423 = vmatpush1.msra.mxu0 %v392
    %424 = vmatprep.subr.mxu0 0.0
    %425 = vmatpush1.msra.mxu0 %v393
    %426 = vmatprep.subr.mxu0 0.0
    %427 = vmatpush1.msra.mxu0 0.0
    %428 = vmatprep.subr.mxu0 0.0
    %429 = vmatpush1.msra.mxu0 0.0
    %430 = vmatprep.subr.mxu0 0.0
    %431 = vmatpush1.msra.mxu0 0.0
    %432 = vmatprep.subr.mxu0 0.0
    %433 = vmatpush1.msra.mxu0 0.0
    %434 = vmatprep.subr.mxu0 0.0
    %435 = vmatpush1.msra.mxu0 0.0
    %436 = vmatprep.subr.mxu0 0.0
    %437 = vmatpush1.msra.mxu0 0.0
    %438 = vmatprep.subr.mxu0 0.0
    %439 = vmatpush1.msra.mxu0 0.0
    %440 = vmatprep.subr.mxu0 0.0
    %441 = vmatpush1.msra.mxu0 0.0
    %442 = vmatprep.subr.mxu0 0.0
    %443 = vmatpush1.msra.mxu0 0.0
    %444 = vmatprep.subr.mxu0 0.0
    %445 = vmatpush1.msra.mxu0 0.0
    %446 = vmatprep.subr.mxu0 0.0
    %447 = vmatpush1.msra.mxu0 0.0
    %448 = vmatprep.subr.mxu0 0.0
    %449 = vmatpush1.msra.mxu0 0.0
    %450 = vmatprep.subr.mxu0 0.0
    %451 = vmatpush1.msra.mxu0 0.0
    %452 = vmatprep.subr.mxu0 0.0
    %453 = vmatpush1.msra.mxu0 0.0
    %454 = vmatprep.subr.mxu0 0.0
    %455 = vmatpush1.msra.mxu0 0.0
    %456 = vmatprep.subr.mxu0 0.0
    %457 = vmatpush1.msra.mxu0 0.0
    %458 = vmatprep.mubr.f32.mxu0 0.0
    %459 = vmatmul.mubr.f32.gmra.mrb[0].mxu0 %v362
    %v460 = vpop.f32.mrb[0].mxu0
    %v461 = vadd.f32 1e-05, %v460
    %v462 = vpop.f32.mrb[0].mxu0
    %463 = vmatprep.mubr.f32.mxu0 0.0
    %464 = vmatmul.mubr.f32.gmra.mrb[0].mxu0 %v363
    %v465 = vpop.f32.mrb[0].mxu0
    %v466 = vadd.f32 1e-05, %v465
    %v467 = vpop.f32.mrb[0].mxu0
    %468 = vmatprep.mubr.f32.mxu0 0.0
    %469 = vmatmul.mubr.f32.gmra.mrb[0].mxu0 %v364
    %v470 = vpop.f32.mrb[0].mxu0
    %v471 = vadd.f32 1e-05, %v470
    %v472 = vpop.f32.mrb[0].mxu0
    %473 = vmatprep.mubr.f32.mxu0 0.0
    %474 = vmatmul.mubr.f32.gmra.mrb[0].mxu0 %v365
    %v475 = vpop.f32.mrb[0].mxu0
    %v476 = vadd.f32 1e-05, %v475
    %v477 = vpop.f32.mrb[0].mxu0
    %478 = vmatprep.mubr.f32.mxu0 0.0
    %479 = vmatmul.mubr.f32.gmra.mrb[0].mxu0 %v366
    %v480 = vpop.f32.mrb[0].mxu0
    %v481 = vadd.f32 1e-05, %v480
    %v482 = vpop.f32.mrb[0].mxu0
    %483 = vmatprep.mubr.f32.mxu0 0.0
    %484 = vmatmul.mubr.f32.gmra.mrb[0].mxu0 %v367
    %v485 = vpop.f32.mrb[0].mxu0
    %v486 = vadd.f32 1e-05, %v485
    %v487 = vpop.f32.mrb[0].mxu0
    %488 = vmatprep.mubr.f32.mxu0 0.0
    %489 = vmatmul.mubr.f32.gmra.mrb[0].mxu0 %v368
    %v490 = vpop.f32.mrb[0].mxu0
    %v491 = vadd.f32 1e-05, %v490
    %v492 = vpop.f32.mrb[0].mxu0
    %493 = vmatprep.mubr.f32.mxu0 0.0
    %494 = vmatmul.mubr.f32.gmra.mrb[0].mxu0 %v369
    %v495 = vpop.f32.mrb[0].mxu0
    %v496 = vadd.f32 1e-05, %v495
    %v497 = vpop.f32.mrb[0].mxu0
    %498 = vmatprep.mubr.f32.mxu0 0.0
    %499 = vmatmul.mubr.f32.gmra.mrb[0].mxu0 %v370
    %v500 = vpop.f32.mrb[0].mxu0
    %v501 = vadd.f32 1e-05, %v500
    %v502 = vpop.f32.mrb[0].mxu0
    %503 = vmatprep.mubr.f32.mxu0 0.0
    %504 = vmatmul.mubr.f32.gmra.mrb[0].mxu0 %v371
    %v505 = vpop.f32.mrb[0].mxu0
    %v506 = vadd.f32 1e-05, %v505
    %v507 = vpop.f32.mrb[0].mxu0
    %508 = vmatprep.mubr.f32.mxu0 0.0
    %509 = vmatmul.mubr.f32.gmra.mrb[0].mxu0 %v372
    %v510 = vpop.f32.mrb[0].mxu0
    %v511 = vadd.f32 1e-05, %v510
    %v512 = vpop.f32.mrb[0].mxu0
    %513 = vmatprep.mubr.f32.mxu0 0.0
    %514 = vmatmul.mubr.f32.gmra.mrb[0].mxu0 %v373
    %v515 = vpop.f32.mrb[0].mxu0
    %v516 = vadd.f32 1e-05, %v515
    %v517 = vpop.f32.mrb[0].mxu0
    %518 = vmatprep.mubr.f32.mxu0 0.0
    %519 = vmatmul.mubr.f32.gmra.mrb[0].mxu0 %v374
    %v520 = vpop.f32.mrb[0].mxu0
    %v521 = vadd.f32 1e-05, %v520
    %v522 = vpop.f32.mrb[0].mxu0
    %523 = vmatprep.mubr.f32.mxu0 0.0
    %524 = vmatmul.mubr.f32.gmra.mrb[0].mxu0 %v375
    %v525 = vpop.f32.mrb[0].mxu0
    %v526 = vadd.f32 1e-05, %v525
    %v527 = vpop.f32.mrb[0].mxu0
    %528 = vmatprep.mubr.f32.mxu0 0.0
    %529 = vmatmul.mubr.f32.gmra.mrb[0].mxu0 %v376
    %v530 = vpop.f32.mrb[0].mxu0
    %v531 = vadd.f32 1e-05, %v530
    %v532 = vpop.f32.mrb[0].mxu0
    %533 = vmatprep.mubr.f32.mxu0 0.0
    %534 = vmatmul.mubr.f32.gmra.mrb[0].mxu0 %v377
    %v535 = vpop.f32.mrb[0].mxu0
    %v536 = vadd.f32 1e-05, %v535
    %v537 = vpop.f32.mrb[0].mxu0
    %538 = vdwg.mxu0
    %v539 = vlog2.pop %v461
    %v540 = vmul.f32 %v539, 0.6931472
    %v541 = vlog2.pop %v466
    %v542 = vmul.f32 %v541, 0.6931472
    %v543 = vlog2.pop %v471
    %v544 = vmul.f32 %v543, 0.6931472
    %v545 = vlog2.pop %v476
    %v546 = vmul.f32 %v545, 0.6931472
    %v547 = vlog2.pop %v481
    %v548 = vmul.f32 %v547, 0.6931472
    %v549 = vlog2.pop %v486
    %v550 = vmul.f32 %v549, 0.6931472
    %v551 = vlog2.pop %v491
    %v552 = vmul.f32 %v551, 0.6931472
    %v553 = vlog2.pop %v496
    %v554 = vmul.f32 %v553, 0.6931472
    %v555 = vlog2.pop %v501
    %v556 = vmul.f32 %v555, 0.6931472
    %v557 = vlog2.pop %v506
    %v558 = vmul.f32 %v557, 0.6931472
    %v559 = vlog2.pop %v511
    %v560 = vmul.f32 %v559, 0.6931472
    %v561 = vlog2.pop %v516
    %v562 = vmul.f32 %v561, 0.6931472
    %v563 = vlog2.pop %v521
    %v564 = vmul.f32 %v563, 0.6931472
    %v565 = vlog2.pop %v526
    %v566 = vmul.f32 %v565, 0.6931472
    %v567 = vlog2.pop %v531
    %v568 = vmul.f32 %v567, 0.6931472
    %v569 = vlog2.pop %v536
    %v570 = vmul.f32 %v569, 0.6931472
    %v571 = vmul.f32 %v540, 0.4342945
    %v572 = vmul.f32 %v542, 0.4342945
    %v573 = vmul.f32 %v544, 0.4342945
    %v574 = vmul.f32 %v546, 0.4342945
    %v575 = vmul.f32 %v548, 0.4342945
    %v576 = vmul.f32 %v550, 0.4342945
    %v577 = vmul.f32 %v552, 0.4342945
    %v578 = vmul.f32 %v554, 0.4342945
    %v579 = vmul.f32 %v556, 0.4342945
    %v580 = vmul.f32 %v558, 0.4342945
    %v581 = vmul.f32 %v560, 0.4342945
    %v582 = vmul.f32 %v562, 0.4342945
    %v583 = vmul.f32 %v564, 0.4342945
    %v584 = vmul.f32 %v566, 0.4342945
    %v585 = vmul.f32 %v568, 0.4342945
    %v586 = vmul.f32 %v570, 0.4342945
    %587 = vst [vmem:[#allocation8] sm:$0xff] %v571
    %588 = vst [vmem:[#allocation8 + $0x8] sm:$0xff] %v572
    %589 = vst [vmem:[#allocation8 + $0x10] sm:$0xff] %v573
    %590 = vst [vmem:[#allocation8 + $0x18] sm:$0xff] %v574
    %591 = vst [vmem:[#allocation8 + $0x20] sm:$0xff] %v575
    %592 = vst [vmem:[#allocation8 + $0x28] sm:$0xff] %v576
    %593 = vst [vmem:[#allocation8 + $0x30] sm:$0xff] %v577
    %594 = vst [vmem:[#allocation8 + $0x38] sm:$0xff] %v578
    %595 = vst [vmem:[#allocation8 + $0x40] sm:$0xff] %v579
    %596 = vst [vmem:[#allocation8 + $0x48] sm:$0xff] %v580
    %597 = vst [vmem:[#allocation8 + $0x50] sm:$0xff] %v581
    %598 = vst [vmem:[#allocation8 + $0x58] sm:$0xff] %v582
    %599 = vst [vmem:[#allocation8 + $0x60] sm:$0xff] %v583
    %600 = vst [vmem:[#allocation8 + $0x68] sm:$0xff] %v584
    %601 = vst [vmem:[#allocation8 + $0x70] sm:$0xff] %v585
    %602 = vst [vmem:[#allocation8 + $0x78] sm:$0xff] %v586
    // Predicated region
    $region26: #{tpu_custom_call.1} parent=1 // pred_check
      _
    $region27: #{tpu_custom_call.1} parent=1 // pred_check_branch
      %604 = sbr.rel (0) target = $region29
    $region28: #{tpu_custom_call.1} parent=1 // pred_region
      %s606 = ssub.s32 2048, 2048
      %607 = vsyncadd [#allocation4], %s606
      %s608 = sshll.u32 [#allocation8], 4
      %s609 = int_to_ptr.vmem [resolvable:$true] %s608
      %614 = dma.vmem_to_hbm [thread:$0]  %s609, 2048, %s3, [#allocation4], 128, 128, 8
    $region29: #{tpu_custom_call.1} parent=1 // pred_fallthru
      _
    // Predicated region
    $region30: #{tpu_custom_call.1} parent=1 // pred_check
      _
    $region31: #{tpu_custom_call.1} parent=1 // pred_check_branch
      %616 = sbr.rel (0) target = $region33
    $region32: #{tpu_custom_call.1} parent=1 // pred_region
      %617 = dma.done [#allocation4], 2048
    $region33: #{tpu_custom_call.1} parent=1 // pred_fallthru
      _
    %618 = vsyncpa [#allocation3], 1
    %619 = vsyncpa [#allocation6], 1
    %620 = vsyncpa [#allocation4], 1

</llo_original>
